<compile_context>
chip_gen: v7x
topology: tpu7x:2x2x1
jax: 0.10.0
libtpu: 0.0.40
codegen_flags: <defaults>
</compile_context>

<pallas_src>
import functools

import jax
import jax.numpy as jnp
from jax.experimental import pallas as pl
from jax.experimental.pallas import tpu as pltpu

OUT_PAD = 128       # lane-dense fused output width: [action logits | value | 0-pad]
ROW_TILE = 16       # bf16 sublane-tile height; weight slabs padded to multiples of it


def _round_up(x, m):
    return ((x + m - 1) // m) * m


# --------------------------------------------------------------------------- #
# Kernel
# --------------------------------------------------------------------------- #
def actor_critic_kernel(s_ref, w1_ref, w2_ref, out_ref, *, state_dim):
    """Fused actor+critic forward for one batch tile.

    s_ref  : (TB, S)               f32   state tile (cast to bf16 in-kernel)
    w1_ref : (S_pad, 2H)           bf16  [wa1 | wc1], bias fused as row S,
                                         zero-padded to S_pad = 16-multiple
    w2_ref : (2H_pad, OUT_PAD)     bf16  block-diag [wa2 0 ; 0 wc2], bias fused
                                         as row 2H, zero-padded to 2H_pad
    out_ref: (TB, OUT_PAD)         f32   [:, :A] = action logits, [:, A] = value
    """
    S = state_dim
    H2 = w1_ref.shape[1]                       # = 2H (also the layer-2 K dim)

    # In-kernel cast (VPU) -- avoids a separate XLA convert op in the wrapper.
    s = s_ref[...].astype(jnp.bfloat16)

    # ---- layer 1 (both heads, one MXU pass) -> (TB, 2H), f32 accumulation ----
    # S and the bias row index are 16-row aligned -> unmasked weight loads.
    h = jnp.dot(s, w1_ref[:S, :], preferred_element_type=jnp.float32)
    h = h + w1_ref[S:S + 1, :].astype(jnp.float32)
    h = jnp.maximum(h, 0.0)                    # ReLU on the VPU

    # ---- layer 2 (block-diagonal, both heads) -> (TB, OUT_PAD), lane-dense ---
    # NOTE(v5e): the f32->bf16 cast of h costs a few pack ops there (no bf16
    # VPU); keep W2 in f32 on v5e if those bundles ever become visible.
    out = jnp.dot(h.astype(jnp.bfloat16), w2_ref[:H2, :],
                  preferred_element_type=jnp.float32)
    out = out + w2_ref[H2:H2 + 1, :].astype(jnp.float32)
    out_ref[...] = out                         # f32, single unmasked vst / row


# --------------------------------------------------------------------------- #
# Wrapper
# --------------------------------------------------------------------------- #
def actor_critic_forward(state, packed, action_dim, *, block_b=256):
    """Fused forward. Returns (action_pred (B,A), value_pred (B,1))."""
    w1p, w2p = packed
    B, S = state.shape
    H2 = w1p.shape[1]                          # 2H
    assert action_dim + 1 <= OUT_PAD

    # Batch tile: full batch if small, else block_b rows per grid step.
    if B <= block_b:
        tb = B                                 # equals full dim -> always legal
    else:
        assert block_b % 8 == 0
        tb = block_b
    grid = (pl.cdiv(B, tb),)

    flops = 2 * B * (S * H2 + H2 * OUT_PAD)
    bytes_accessed = (B * S * 4                # f32 state in
                      + w1p.size * 2           # bf16 W1 slab (VMEM-resident)
                      + w2p.size * 2           # bf16 W2 slab (VMEM-resident)
                      + B * OUT_PAD * 4)       # f32 fused output
    ce = pl.CostEstimate(flops=flops, transcendentals=0,
                         bytes_accessed=bytes_accessed)

    fused = pl.pallas_call(
        functools.partial(actor_critic_kernel, state_dim=S),
        out_shape=jax.ShapeDtypeStruct((B, OUT_PAD), jnp.float32),
        grid=grid,
        in_specs=[
            pl.BlockSpec((tb, S), lambda i: (i, 0)),           # state tile
            pl.BlockSpec(w1p.shape, lambda i: (0, 0)),         # W1 slab, resident
            pl.BlockSpec(w2p.shape, lambda i: (0, 0)),         # W2 slab, resident
        ],
        out_specs=pl.BlockSpec((tb, OUT_PAD), lambda i: (i, 0)),
        compiler_params=pltpu.CompilerParams(
            dimension_semantics=("parallel",)),                # megacore on v7x
        cost_estimate=ce,
    )(state, w1p, w2p)

    # Slice the lane-dense fused output outside the kernel.  (Each slice is a
    # tiny copy op; consumers that can index `fused` directly should do so.)
    action_pred = fused[:, :action_dim]
    value_pred = fused[:, action_dim:action_dim + 1]
    return action_pred, value_pred


# --------------------------------------------------------------------------- #
# Parameter init (PyTorch nn.Linear default) and one-time packing
# --------------------------------------------------------------------------- #
def init_params(key, state_dim, hidden_dim, action_dim):
    """PyTorch-Linear-style init: U(-1/sqrt(fan_in), 1/sqrt(fan_in))."""
    ks = jax.random.split(key, 8)

    def linear(kw, kb, fan_in, fan_out):
        bound = 1.0 / jnp.sqrt(jnp.float32(fan_in))
        w = jax.random.uniform(kw, (fan_in, fan_out), jnp.float32, -bound, bound)
        b = jax.random.uniform(kb, (1, fan_out), jnp.float32, -bound, bound)
        return w, b

    wa1, ba1 = linear(ks[0], ks[1], state_dim, hidden_dim)
    wa2, ba2 = linear(ks[2], ks[3], hidden_dim, action_dim)
    wc1, bc1 = linear(ks[4], ks[5], state_dim, hidden_dim)
    wc2, bc2 = linear(ks[6], ks[7], hidden_dim, 1)
    return (wa1, ba1, wa2, ba2, wc1, bc1, wc2, bc2)


def pack_params(params):
    """Fuse actor+critic weights into two bf16 slabs (done once, not per call).

    W1 slab: rows [0:S)   = [wa1 | wc1], row S  = fused bias, zero-pad to 16-mult.
    W2 slab: rows [0:2H)  = block-diag [wa2 0 ; 0 wc2], row 2H = fused bias,
             zero-pad to 16-mult; OUT_PAD lanes wide.
    """
    wa1, ba1, wa2, ba2, wc1, bc1, wc2, bc2 = params
    S, H = wa1.shape
    A = wa2.shape[1]
    assert A + 1 <= OUT_PAD

    # ---- layer 1 slab: (S_pad, 2H) ----
    S_pad = _round_up(S + 1, ROW_TILE)
    w1p = jnp.zeros((S_pad, 2 * H), jnp.float32)
    w1p = w1p.at[:S, :H].set(wa1)
    w1p = w1p.at[:S, H:].set(wc1)
    w1p = w1p.at[S, :H].set(ba1[0])
    w1p = w1p.at[S, H:].set(bc1[0])

    # ---- layer 2 slab: (2H_pad, OUT_PAD), block-diagonal ----
    H2 = 2 * H
    H2_pad = _round_up(H2 + 1, ROW_TILE)
    w2p = jnp.zeros((H2_pad, OUT_PAD), jnp.float32)
    w2p = w2p.at[:H, :A].set(wa2)                    # actor block
    w2p = w2p.at[H:H2, A:A + 1].set(wc2)             # critic block
    w2p = w2p.at[H2, :A].set(ba2[0])
    w2p = w2p.at[H2, A:A + 1].set(bc2[0])

    return w1p.astype(jnp.bfloat16), w2p.astype(jnp.bfloat16)


# --------------------------------------------------------------------------- #
# References
# --------------------------------------------------------------------------- #
def reference_forward(state, params):
    """Pure-JAX f32 reference of the original PyTorch module."""
    wa1, ba1, wa2, ba2, wc1, bc1, wc2, bc2 = params
    ha = jnp.maximum(state @ wa1 + ba1, 0.0)
    action = ha @ wa2 + ba2
    hc = jnp.maximum(state @ wc1 + bc1, 0.0)
    value = hc @ wc2 + bc2
    return action, value


def reference_forward_bf16(state, packed, state_dim, action_dim):
    """Pure-JAX reference of the exact bf16/f32-acc path the kernel computes."""
    w1p, w2p = packed
    H2 = w1p.shape[1]
    s = state.astype(jnp.bfloat16)
    h = jnp.dot(s, w1p[:state_dim], preferred_element_type=jnp.float32)
    h = jnp.maximum(h + w1p[state_dim:state_dim + 1].astype(jnp.float32), 0.0)
    out = jnp.dot(h.astype(jnp.bfloat16), w2p[:H2],
                  preferred_element_type=jnp.float32)
    out = out + w2p[H2:H2 + 1].astype(jnp.float32)
    return out[:, :action_dim], out[:, action_dim:action_dim + 1]


# --------------------------------------------------------------------------- #
if __name__ == "__main__":
    key = jax.random.PRNGKey(0)
    k_state, k_params = jax.random.split(key)

    batch, state_dim, hidden_dim, action_dim = 8, 32, 64, 4
    state = jax.random.normal(k_state, (batch, state_dim), jnp.float32)
    params = init_params(k_params, state_dim, hidden_dim, action_dim)
    packed = pack_params(params)   # one-time weight fusion / bf16 cast

    action_pred, value_pred = actor_critic_forward(state, packed, action_dim)
    jax.block_until_ready((action_pred, value_pred))

    assert action_pred.shape == (batch, action_dim)
    assert value_pred.shape == (batch, 1)

    # 1) kernel matches the identical bf16/f32-accumulation path tightly
    ref_a_bf16, ref_v_bf16 = reference_forward_bf16(state, packed,
                                                    state_dim, action_dim)
    assert jnp.allclose(action_pred, ref_a_bf16, atol=1e-3, rtol=1e-3)
    assert jnp.allclose(value_pred, ref_v_bf16, atol=1e-3, rtol=1e-3)

    # 2) kernel matches the original f32 module semantics within bf16 tolerance
    ref_action, ref_value = reference_forward(state, params)
    assert jnp.allclose(action_pred, ref_action, atol=5e-2, rtol=5e-2)
    assert jnp.allclose(value_pred, ref_value, atol=5e-2, rtol=5e-2)

    # 3) larger batch exercises the ("parallel",) batch grid path
    big_b = 1024
    big_state = jax.random.normal(jax.random.PRNGKey(1), (big_b, state_dim),
                                  jnp.float32)
    a_big, v_big = actor_critic_forward(big_state, packed, action_dim,
                                        block_b=256)
    jax.block_until_ready((a_big, v_big))
    ra, rv = reference_forward(big_state, params)
    assert a_big.shape == (big_b, action_dim) and v_big.shape == (big_b, 1)
    assert jnp.allclose(a_big, ra, atol=5e-2, rtol=5e-2)
    assert jnp.allclose(v_big, rv, atol=5e-2, rtol=5e-2)

    print("KERNEL_OK")
</pallas_src>

<mosaic_0001>
module attributes {stable_mosaic.version = 11 : i64} {
  func.func @actor_critic_kernel(%arg0: i32, %arg1: memref<8x32xf32, #tpu.memory_space<vmem>>, %arg2: memref<48x128xbf16, #tpu.memory_space<vmem>>, %arg3: memref<144x128xbf16, #tpu.memory_space<vmem>>, %arg4: memref<8x128xf32, #tpu.memory_space<vmem>>) attributes {dimension_semantics = [#tpu.dimension_semantics<parallel>], iteration_bounds = array<i64: 1>, scalar_prefetch = 0 : i64, scratch_operands = 0 : i64, tpu.core_type = #tpu.core_type<tc>, window_params = [{transform_indices = @transform_0, window_bounds = array<i64: 8, 32>}, {pipeline_mode = #tpu.pipeline_mode<synchronous>, transform_indices = @transform_1, window_bounds = array<i64: 48, 128>}, {pipeline_mode = #tpu.pipeline_mode<synchronous>, transform_indices = @transform_2, window_bounds = array<i64: 144, 128>}, {transform_indices = @transform_3, window_bounds = array<i64: 8, 128>}]} {
    %c0 = arith.constant 0 : index
    %c0_0 = arith.constant 0 : index
    %0 = vector.load %arg1[%c0, %c0_0] : memref<8x32xf32, #tpu.memory_space<vmem>>, vector<8x32xf32>
    %1 = arith.truncf %0 : vector<8x32xf32> to vector<8x32xbf16>
    %c0_1 = arith.constant 0 : index
    %c0_2 = arith.constant 0 : index
    %2 = vector.load %arg2[%c0_1, %c0_2] : memref<48x128xbf16, #tpu.memory_space<vmem>>, vector<32x128xbf16>
    %cst = arith.constant dense<0.000000e+00> : vector<8x128xf32>
    %3 = tpu.matmul %1, %2, %cst {dimension_numbers = #tpu.dot_dimension_numbers<[1], [0], [0], [1], [0, 0, 1, 1], [], []>} : vector<8x32xbf16>, vector<32x128xbf16>, vector<8x128xf32> -> vector<8x128xf32>
    %c32 = arith.constant 32 : index
    %c0_3 = arith.constant 0 : index
    %4 = vector.load %arg2[%c32, %c0_3] : memref<48x128xbf16, #tpu.memory_space<vmem>>, vector<1x128xbf16>
    %5 = arith.extf %4 : vector<1x128xbf16> to vector<1x128xf32>
    %6 = vector.broadcast %5 : vector<1x128xf32> to vector<8x128xf32>
    %7 = arith.addf %3, %6 : vector<8x128xf32>
    %cst_4 = arith.constant 0.000000e+00 : f32
    %8 = vector.broadcast %cst_4 : f32 to vector<8x128xf32>
    %9 = arith.maximumf %7, %8 : vector<8x128xf32>
    %10 = arith.truncf %9 : vector<8x128xf32> to vector<8x128xbf16>
    %c0_5 = arith.constant 0 : index
    %c0_6 = arith.constant 0 : index
    %11 = vector.load %arg3[%c0_5, %c0_6] : memref<144x128xbf16, #tpu.memory_space<vmem>>, vector<128x128xbf16>
    %cst_7 = arith.constant dense<0.000000e+00> : vector<8x128xf32>
    %12 = tpu.matmul %10, %11, %cst_7 {dimension_numbers = #tpu.dot_dimension_numbers<[1], [0], [0], [1], [0, 0, 1, 1], [], []>} : vector<8x128xbf16>, vector<128x128xbf16>, vector<8x128xf32> -> vector<8x128xf32>
    %c128 = arith.constant 128 : index
    %c0_8 = arith.constant 0 : index
    %13 = vector.load %arg3[%c128, %c0_8] : memref<144x128xbf16, #tpu.memory_space<vmem>>, vector<1x128xbf16>
    %14 = arith.extf %13 : vector<1x128xbf16> to vector<1x128xf32>
    %15 = vector.broadcast %14 : vector<1x128xf32> to vector<8x128xf32>
    %16 = arith.addf %12, %15 : vector<8x128xf32>
    %c0_9 = arith.constant 0 : index
    %c0_10 = arith.constant 0 : index
    %17 = vector.load %arg4[%c0_9, %c0_10] : memref<8x128xf32, #tpu.memory_space<vmem>>, vector<8x128xf32>
    tpu.vector_store %arg4[%c0_9, %c0_10], %16 {strides = array<i32>} : memref<8x128xf32, #tpu.memory_space<vmem>>, vector<8x128xf32>,
    return
  }
  func.func @transform_0(%arg0: i32) -> (i32, i32) {
    %c0_i32 = arith.constant 0 : i32
    %c0_i32_0 = arith.constant 0 : i32
    return %arg0, %c0_i32 : i32, i32
  }
  func.func @transform_1(%arg0: i32) -> (i32, i32) {
    %c0_i32 = arith.constant 0 : i32
    %c0_i32_0 = arith.constant 0 : i32
    %c0_i32_1 = arith.constant 0 : i32
    return %c0_i32, %c0_i32_0 : i32, i32
  }
  func.func @transform_2(%arg0: i32) -> (i32, i32) {
    %c0_i32 = arith.constant 0 : i32
    %c0_i32_0 = arith.constant 0 : i32
    %c0_i32_1 = arith.constant 0 : i32
    return %c0_i32, %c0_i32_0 : i32, i32
  }
  func.func @transform_3(%arg0: i32) -> (i32, i32) {
    %c0_i32 = arith.constant 0 : i32
    %c0_i32_0 = arith.constant 0 : i32
    return %arg0, %c0_i32 : i32, i32
  }
}

</mosaic_0001>

<llo_original>
// kernel: tpu_custom_call.1
$region0: #{tpu_custom_call.1}
  #allocation0 [shape = 'u32[]', space=smem, size = 0x4, offset = 0x4, fixed_abs, tag = 'smem constant byte address 0x4 - core index']
  #allocation1 [shape = 'u32[144,128]{1,0:T(1,128)}', space=vmem, size = 0x12000, scoped, tag = 'internal scratch']
  %s0 = inlined_call_operand.hbm [shape: f32[8,32], index: 0, kind: input, shape index: {}]
  %s1 = inlined_call_operand.hbm [shape: bf16[48,128], index: 1, kind: input, shape index: {}]
  %s2 = inlined_call_operand.hbm [shape: bf16[144,128], index: 2, kind: input, shape index: {}]
  %s3 = inlined_call_operand.hbm [shape: f32[8,128], index: 3, kind: output, shape index: {}]
  %s4 = sld [smem:[#allocation0]]
  $region34: #{tpu_custom_call.1} parent=0
    _
  %s6 = ssub.s32 1, %s4
  %s7 = scalar_select 0, %s6, %s4
  $region1: #{tpu_custom_call.1} parent=0
    #allocation2 [shape = 'u8[4096]{0}', space=vmem, size = 0x1000, scoped, tag = 'input window, operand 0, single buffered']
    #allocation3 [shape = 's32[1]{0}', space=sflag, size = 0x4, scoped, tag = 'scoped memory for tpu_custom_call.1']
    #allocation4 [shape = 's32[1]{0}', space=sflag, size = 0x4, scoped, tag = 'scoped memory for tpu_custom_call.1']
    #allocation5 [shape = 'u8[12288]{0}', space=vmem, size = 0x3000, scoped, tag = 'input window, operand 1, single buffered']
    #allocation6 [shape = 's32[1]{0}', space=sflag, size = 0x4, scoped, tag = 'scoped memory for tpu_custom_call.1']
    #allocation7 [shape = 'u8[36864]{0}', space=vmem, size = 0x9000, scoped, tag = 'input window, operand 2, single buffered']
    #allocation8 [shape = 'u8[4096]{0}', space=vmem, size = 0x1000, scoped, tag = 'output window, operand 0, single buffered']
    %8 = vsyncpa [#allocation3], 0
    %9 = vsyncpa [#allocation6], 0
    %10 = vsyncpa [#allocation4], 0
    // Predicated region
    $region2: #{tpu_custom_call.1} parent=1 // pred_check
      _
    $region3: #{tpu_custom_call.1} parent=1 // pred_check_branch
      %12 = sbr.rel (0) target = $region5
    $region4: #{tpu_custom_call.1} parent=1 // pred_region
      %s14 = ssub.s32 128, 128
      %15 = vsyncadd [#allocation3], %s14
      %s17 = sshll.u32 [#allocation2], 4
      %s18 = int_to_ptr.vmem [resolvable:$true] %s17
      %20 = dma.hbm_to_vmem [thread:$0]  %s0, 128, %s18, [#allocation3]
    $region5: #{tpu_custom_call.1} parent=1 // pred_fallthru
      _
    // Predicated region
    $region6: #{tpu_custom_call.1} parent=1 // pred_check
      _
    $region7: #{tpu_custom_call.1} parent=1 // pred_check_branch
      %22 = sbr.rel (0) target = $region9
    $region8: #{tpu_custom_call.1} parent=1 // pred_region
      %s24 = ssub.s32 384, 384
      %25 = vsyncadd [#allocation6], %s24
      %s26 = sshll.u32 [#allocation5], 4
      %s27 = int_to_ptr.vmem [resolvable:$true] %s26
      %32 = dma.hbm_to_vmem [thread:$0]  %s1, 384, %s27, [#allocation6], 64, 64, 4
    $region9: #{tpu_custom_call.1} parent=1 // pred_fallthru
      _
    // Predicated region
    $region10: #{tpu_custom_call.1} parent=1 // pred_check
      _
    $region11: #{tpu_custom_call.1} parent=1 // pred_check_branch
      %34 = sbr.rel (0) target = $region13
    $region12: #{tpu_custom_call.1} parent=1 // pred_region
      %s36 = ssub.s32 1152, 1152
      %37 = vsyncadd [#allocation6], %s36
      %s38 = sshll.u32 [#allocation7], 4
      %s39 = int_to_ptr.vmem [resolvable:$true] %s38
      %44 = dma.hbm_to_vmem [thread:$0]  %s2, 1152, %s39, [#allocation6], 64, 64, 4
    $region13: #{tpu_custom_call.1} parent=1 // pred_fallthru
      _
    // Predicated region
    $region14: #{tpu_custom_call.1} parent=1 // pred_check
      _
    $region15: #{tpu_custom_call.1} parent=1 // pred_check_branch
      %46 = sbr.rel (0) target = $region17
    $region16: #{tpu_custom_call.1} parent=1 // pred_region
      %47 = dma.done [#allocation3], 128
    $region17: #{tpu_custom_call.1} parent=1 // pred_fallthru
      _
    // Predicated region
    $region18: #{tpu_custom_call.1} parent=1 // pred_check
      _
    $region19: #{tpu_custom_call.1} parent=1 // pred_check_branch
      %49 = sbr.rel (0) target = $region21
    $region20: #{tpu_custom_call.1} parent=1 // pred_region
      %50 = dma.done [#allocation6], 384
    $region21: #{tpu_custom_call.1} parent=1 // pred_fallthru
      _
    // Predicated region
    $region22: #{tpu_custom_call.1} parent=1 // pred_check
      _
    $region23: #{tpu_custom_call.1} parent=1 // pred_check_branch
      %52 = sbr.rel (0) target = $region25
    $region24: #{tpu_custom_call.1} parent=1 // pred_region
      %53 = dma.done [#allocation6], 1152
    $region25: #{tpu_custom_call.1} parent=1 // pred_fallthru
      _
    %v55 = vld [vmem:[#allocation2] sm:$0xff]
    %v56 = vpack.c.bf16 %v55, %v55
    %v57 = vld [vmem:[#allocation5] sm:$0xf]
    %v58 = vld [vmem:[#allocation5 + $0x4] sm:$0xf]
    %v59 = vld [vmem:[#allocation5 + $0x8] sm:$0xf]
    %v60 = vld [vmem:[#allocation5 + $0xc] sm:$0xf]
    %v61 = vld [vmem:[#allocation5 + $0x10] sm:$0x1]
    %v62 = vunpack.c.l.bf16 %v61
    %v63 = vlaneseq
    %v64 = vshrl.u32 %v63, 7
    %v65 = vsub.s32 0, %v64
    %v66 = vrot.slane %v62, %v65
    %v71 = vunpack.c.l.b16 %v57
    %v72 = vunpack.c.l.b16 %v58
    %v73 = vunpack.c.l.b16 %v59
    %v74 = vunpack.c.l.b16 %v60
    %v75 = vpack.c.b16 %v72, %v71
    %v76 = vpack.c.b16 %v74, %v73
    %vm79 = vcmask 261120
    %v81 = vsel %vm79, %v56, 0
    %83 = vmatprep.subr.bf16.mxu0 0
    %84 = vmatpush1.bf16.msra.mxu0 %v75
    %85 = vmatprep.subr.bf16.mxu0 0
    %86 = vmatpush1.bf16.msra.mxu0 %v76
    %87 = vmatprep.subr.bf16.mxu0 0
    %88 = vmatpush1.bf16.msra.mxu0 0
    %89 = vmatprep.subr.bf16.mxu0 0
    %90 = vmatpush1.bf16.msra.mxu0 0
    %91 = vmatprep.subr.bf16.mxu0 0
    %92 = vmatpush1.bf16.msra.mxu0 0
    %93 = vmatprep.subr.bf16.mxu0 0
    %94 = vmatpush1.bf16.msra.mxu0 0
    %95 = vmatprep.subr.bf16.mxu0 0
    %96 = vmatpush1.bf16.msra.mxu0 0
    %97 = vmatprep.subr.bf16.mxu0 0
    %98 = vmatpush1.bf16.msra.mxu0 0
    %99 = vmatprep.subr.bf16.mxu0 0
    %100 = vmatpush1.bf16.msra.mxu0 0
    %101 = vmatprep.subr.bf16.mxu0 0
    %102 = vmatpush1.bf16.msra.mxu0 0
    %103 = vmatprep.subr.bf16.mxu0 0
    %104 = vmatpush1.bf16.msra.mxu0 0
    %105 = vmatprep.subr.bf16.mxu0 0
    %106 = vmatpush1.bf16.msra.mxu0 0
    %107 = vmatprep.subr.bf16.mxu0 0
    %108 = vmatpush1.bf16.msra.mxu0 0
    %109 = vmatprep.subr.bf16.mxu0 0
    %110 = vmatpush1.bf16.msra.mxu0 0
    %111 = vmatprep.subr.bf16.mxu0 0
    %112 = vmatpush1.bf16.msra.mxu0 0
    %113 = vmatprep.subr.bf16.mxu0 0
    %114 = vmatpush1.bf16.msra.mxu0 0
    %115 = vmatprep.mubr.bf16.mxu0 0
    %116 = vmatmul.mubr.bf16.gmra.mrb[0].mxu0 %v81
    %v117 = vpop.f32.mrb[0].mxu0
    %v118 = vadd.f32 %v66, %v117
    %v119 = vpop.f32.mrb[0].mxu0
    %v120 = vpop.f32.mrb[0].mxu0
    %v121 = vpop.f32.mrb[0].mxu0
    %122 = vdwg.mxu0
    %v123 = vmax.f32 %v118, 0.0
    %v124 = vpack.c.bf16 %v123, %v123
    %v125 = vld [vmem:[#allocation7] sm:$0xf]
    %v126 = vld [vmem:[#allocation7 + $0x4] sm:$0xf]
    %v127 = vld [vmem:[#allocation7 + $0x8] sm:$0xf]
    %v128 = vld [vmem:[#allocation7 + $0xc] sm:$0xf]
    %v129 = vld [vmem:[#allocation7 + $0x10] sm:$0xf]
    %v130 = vld [vmem:[#allocation7 + $0x14] sm:$0xf]
    %v131 = vld [vmem:[#allocation7 + $0x18] sm:$0xf]
    %v132 = vld [vmem:[#allocation7 + $0x1c] sm:$0xf]
    %v133 = vld [vmem:[#allocation7 + $0x20] sm:$0xf]
    %v134 = vld [vmem:[#allocation7 + $0x24] sm:$0xf]
    %v135 = vld [vmem:[#allocation7 + $0x28] sm:$0xf]
    %v136 = vld [vmem:[#allocation7 + $0x2c] sm:$0xf]
    %v137 = vld [vmem:[#allocation7 + $0x30] sm:$0xf]
    %v138 = vld [vmem:[#allocation7 + $0x34] sm:$0xf]
    %v139 = vld [vmem:[#allocation7 + $0x38] sm:$0xf]
    %v140 = vld [vmem:[#allocation7 + $0x3c] sm:$0xf]
    %v141 = vld [vmem:[#allocation7 + $0x40] sm:$0x1]
    %v142 = vunpack.c.l.bf16 %v141
    %v143 = vlaneseq
    %v144 = vshrl.u32 %v143, 7
    %v145 = vsub.s32 0, %v144
    %v146 = vrot.slane %v142, %v145
    %v163 = vunpack.c.l.b16 %v125
    %v164 = vunpack.c.l.b16 %v126
    %v165 = vunpack.c.l.b16 %v127
    %v166 = vunpack.c.l.b16 %v128
    %v167 = vunpack.c.l.b16 %v129
    %v168 = vunpack.c.l.b16 %v130
    %v169 = vunpack.c.l.b16 %v131
    %v170 = vunpack.c.l.b16 %v132
    %v171 = vunpack.c.l.b16 %v133
    %v172 = vunpack.c.l.b16 %v134
    %v173 = vunpack.c.l.b16 %v135
    %v174 = vunpack.c.l.b16 %v136
    %v175 = vunpack.c.l.b16 %v137
    %v176 = vunpack.c.l.b16 %v138
    %v177 = vunpack.c.l.b16 %v139
    %v178 = vunpack.c.l.b16 %v140
    %v179 = vpack.c.b16 %v164, %v163
    %v180 = vpack.c.b16 %v166, %v165
    %v181 = vpack.c.b16 %v168, %v167
    %v182 = vpack.c.b16 %v170, %v169
    %v183 = vpack.c.b16 %v172, %v171
    %v184 = vpack.c.b16 %v174, %v173
    %v185 = vpack.c.b16 %v176, %v175
    %v186 = vpack.c.b16 %v178, %v177
    %195 = vmatprep.subr.bf16.mxu0 0
    %196 = vmatpush1.bf16.msra.mxu0 %v179
    %197 = vmatprep.subr.bf16.mxu0 0
    %198 = vmatpush1.bf16.msra.mxu0 %v180
    %199 = vmatprep.subr.bf16.mxu0 0
    %200 = vmatpush1.bf16.msra.mxu0 %v181
    %201 = vmatprep.subr.bf16.mxu0 0
    %202 = vmatpush1.bf16.msra.mxu0 %v182
    %203 = vmatprep.subr.bf16.mxu0 0
    %204 = vmatpush1.bf16.msra.mxu0 %v183
    %205 = vmatprep.subr.bf16.mxu0 0
    %206 = vmatpush1.bf16.msra.mxu0 %v184
    %207 = vmatprep.subr.bf16.mxu0 0
    %208 = vmatpush1.bf16.msra.mxu0 %v185
    %209 = vmatprep.subr.bf16.mxu0 0
    %210 = vmatpush1.bf16.msra.mxu0 %v186
    %211 = vmatprep.subr.bf16.mxu0 0
    %212 = vmatpush1.bf16.msra.mxu0 0
    %213 = vmatprep.subr.bf16.mxu0 0
    %214 = vmatpush1.bf16.msra.mxu0 0
    %215 = vmatprep.subr.bf16.mxu0 0
    %216 = vmatpush1.bf16.msra.mxu0 0
    %217 = vmatprep.subr.bf16.mxu0 0
    %218 = vmatpush1.bf16.msra.mxu0 0
    %219 = vmatprep.subr.bf16.mxu0 0
    %220 = vmatpush1.bf16.msra.mxu0 0
    %221 = vmatprep.subr.bf16.mxu0 0
    %222 = vmatpush1.bf16.msra.mxu0 0
    %223 = vmatprep.subr.bf16.mxu0 0
    %224 = vmatpush1.bf16.msra.mxu0 0
    %225 = vmatprep.subr.bf16.mxu0 0
    %226 = vmatpush1.bf16.msra.mxu0 0
    %227 = vmatprep.mubr.bf16.mxu0 0
    %228 = vmatmul.mubr.bf16.gmra.mrb[0].mxu0 %v124
    %v229 = vpop.f32.mrb[0].mxu0
    %v230 = vadd.f32 %v146, %v229
    %v231 = vpop.f32.mrb[0].mxu0
    %v232 = vpop.f32.mrb[0].mxu0
    %v233 = vpop.f32.mrb[0].mxu0
    %234 = vdwg.mxu0
    %235 = vst [vmem:[#allocation8] sm:$0xff] %v230
    // Predicated region
    $region26: #{tpu_custom_call.1} parent=1 // pred_check
      _
    $region27: #{tpu_custom_call.1} parent=1 // pred_check_branch
      %237 = sbr.rel (0) target = $region29
    $region28: #{tpu_custom_call.1} parent=1 // pred_region
      %s239 = ssub.s32 128, 128
      %240 = vsyncadd [#allocation4], %s239
      %s242 = sshll.u32 [#allocation8], 4
      %s243 = int_to_ptr.vmem [resolvable:$true] %s242
      %245 = dma.vmem_to_hbm [thread:$0]  %s243, 128, %s3, [#allocation4]
    $region29: #{tpu_custom_call.1} parent=1 // pred_fallthru
      _
    // Predicated region
    $region30: #{tpu_custom_call.1} parent=1 // pred_check
      _
    $region31: #{tpu_custom_call.1} parent=1 // pred_check_branch
      %247 = sbr.rel (0) target = $region33
    $region32: #{tpu_custom_call.1} parent=1 // pred_region
      %248 = dma.done [#allocation4], 128
    $region33: #{tpu_custom_call.1} parent=1 // pred_fallthru
      _
    %249 = vsyncpa [#allocation3], 1
    %250 = vsyncpa [#allocation6], 1
    %251 = vsyncpa [#allocation4], 1

</llo_original>
